<compile_context>
chip_gen: v5e
topology: v5e:2x2
jax: 0.10.0
libtpu: 0.0.40
codegen_flags: <defaults>
</compile_context>

<pallas_src>
import functools

import jax
import jax.numpy as jnp
import numpy as np
from jax import lax
from jax.experimental import pallas as pl
from jax.experimental.pallas import tpu as pltpu

_VMEM_BUDGET = 24 * 1024 * 1024   # per-step working-set target (padded accounting)
_VMEM_LIMIT = 48 * 1024 * 1024    # scoped VMEM cap: safe on v5e/v6e (128 MiB) and v7x (64 MiB)


def _cdiv(a, b):
    return -(-a // b)


def _round_up(a, b):
    return _cdiv(a, b) * b


# ----------------------------- Pallas kernels ------------------------------

def _deconv_stats_kernel(m_true, w_ref, p_ref, y_ref, sum_ref, m2_ref):
    """Fused phase-deconv matmul + BatchNorm partial statistics (epilogue).

    w_ref : [C2, K]  bf16   phase-expanded weights (rows = (rh, rw, cout))
    p_ref : [K, tm]  bf16   shifted-input patches, lane-dense along M
    y_ref : [C2, tm] bf16   pre-BN deconv output (channel-major, lane-dense)
    sum_ref / m2_ref : [1, C2, 1] f32  per-tile partial sum / centered M2
    """
    tm = p_ref.shape[1]
    r = jnp.dot(w_ref[...], p_ref[...], preferred_element_type=jnp.float32)  # [C2, tm]
    y_ref[...] = r.astype(y_ref.dtype)

    # Stats epilogue (VPU/XLU filler under the DMA-bound store): mask padded
    # columns, per-row sum and tile-mean-centered M2 for a stable Chan combine.
    col = pl.program_id(0) * tm + lax.broadcasted_iota(jnp.int32, (1, tm), 1)
    mask = col < m_true
    cnt = jnp.maximum(jnp.sum(mask.astype(jnp.float32), axis=1, keepdims=True), 1.0)
    rv = jnp.where(mask, r, 0.0)
    rowsum = jnp.sum(rv, axis=1, keepdims=True)                  # [C2, 1]
    mean = rowsum / cnt
    d = jnp.where(mask, r - mean, 0.0)
    m2 = jnp.sum(d * d, axis=1, keepdims=True)                   # [C2, 1]
    sum_ref[...] = rowsum[None]
    m2_ref[...] = m2[None]


def _bn_relu_kernel(y_ref, scale_ref, shift_ref, o_ref):
    # Fused folded-BatchNorm affine + ReLU on a lane-dense [C2, tm] block.
    o_ref[...] = jnp.maximum(
        y_ref[...].astype(jnp.float32) * scale_ref[...] + shift_ref[...], 0.0)


# ------------------------------- wrapper ------------------------------------

def basic_deconv2d(x, weight, gamma, beta, *, stride, padding, eps=1e-5,
                   tile_m=8192):
    """x: [N, Cin, H, W] f32 (NCHW); weight: [Cin, Cout, kH, kW] (PyTorch
    ConvTranspose2d layout, bias=False); gamma/beta: [Cout]."""
    N, Cin, H, W = x.shape
    Cin_w, Cout, kH, kW = weight.shape
    assert Cin == Cin_w
    s, p = stride, padding
    OH = (H - 1) * s - 2 * p + kH
    OW = (W - 1) * s - 2 * p + kW
    # TODO(synk): the phase decomposition assumes OH, OW divisible by stride
    # (holds for the DCGAN configs this module uses, e.g. k=4, s=2, p=1).
    assert OH % s == 0 and OW % s == 0
    Qh, Qw = OH // s, OW // s

    # Sub-pixel phases: output (s*qh+rh, s*qw+rw) reads x[qh-eh, qw-ew] for the
    # taps kh = s*eh + rh + p (likewise kw).  Union of shifts over all phases:
    ehs = sorted({(kh - p) // s for kh in range(kH)})
    ews = sorted({(kw - p) // s for kw in range(kW)})
    K = len(ehs) * len(ews) * Cin          # contraction dim of the phase matmul
    C2 = s * s * Cout                      # phase-expanded output channels
    M = N * Qh * Qw                        # flattened (n, qh, qw) positions

    # ---- XLA glue: shifted-input patch matrix P_T[K, M] (bf16) --------------
    pad_t = max(0, max(ehs)); pad_b = max(0, Qh - H - min(ehs))
    pad_l = max(0, max(ews)); pad_r = max(0, Qw - W - min(ews))
    x_pad = jnp.pad(x, ((0, 0), (0, 0), (pad_t, pad_b), (pad_l, pad_r)))
    taps = []
    for eh in ehs:
        for ew in ews:
            taps.append(x_pad[:, :, pad_t - eh: pad_t - eh + Qh,
                                    pad_l - ew: pad_l - ew + Qw])   # [N, Cin, Qh, Qw]
    p_t = (jnp.stack(taps, axis=0)             # [Sh*Sw, N, Cin, Qh, Qw]
             .transpose(0, 2, 1, 3, 4)         # [Sh*Sw, Cin, N, Qh, Qw]
             .reshape(K, M)
             .astype(jnp.bfloat16))

    # ---- XLA glue: phase-expanded weight W2T[C2, K] (bf16) ------------------
    rows = []
    for rh in range(s):
        for rw in range(s):
            blocks = []
            for eh in ehs:
                for ew in ews:
                    kh = s * eh + rh + p
                    kw = s * ew + rw + p
                    if 0 <= kh < kH and 0 <= kw < kW:
                        blocks.append(weight[:, :, kh, kw].T)        # [Cout, Cin]
                    else:
                        blocks.append(jnp.zeros((Cout, Cin), weight.dtype))
            rows.append(jnp.concatenate(blocks, axis=1))             # [Cout, K]
    w2t = jnp.concatenate(rows, axis=0).astype(jnp.bfloat16)         # [C2, K]

    # ---- tile sizing: padded-VMEM accounting, >=2 parallel steps when possible
    def vmem_est(t):
        p_buf = _round_up(K, 16) * t * 2                 # bf16 P block (sublane pad)
        y_buf = _round_up(C2, 16) * t * 2                # bf16 y block
        w_buf = _round_up(C2, 16) * _round_up(K, 128) * 2
        tmp = 3 * _round_up(C2, 8) * t * 4               # f32 matmul result + stat temps
        return 2 * (p_buf + y_buf + w_buf) + tmp + (1 << 17)

    tm = min(_round_up(tile_m, 128), _round_up(M, 128))
    if M > 128:                                          # keep >=2 grid steps (v7x megacore)
        tm = min(tm, _round_up(_cdiv(M, 2), 128))
    while tm > 128 and vmem_est(tm) > _VMEM_BUDGET:
        tm = max(128, (tm // 2 // 128) * 128)
    Mp = _round_up(M, tm)
    T = Mp // tm
    if Mp != M:
        p_t = jnp.pad(p_t, ((0, 0), (0, Mp - M)))        # zero cols -> zero y, masked stats

    # ---- stage 1: fused deconv matmul + BN partial stats (single pallas_call)
    y_t, part_sum, part_m2 = pl.pallas_call(
        functools.partial(_deconv_stats_kernel, M),
        out_shape=(jax.ShapeDtypeStruct((C2, Mp), jnp.bfloat16),
                   jax.ShapeDtypeStruct((T, C2, 1), jnp.float32),
                   jax.ShapeDtypeStruct((T, C2, 1), jnp.float32)),
        grid_spec=pltpu.PrefetchScalarGridSpec(
            num_scalar_prefetch=0,
            grid=(T,),
            in_specs=[pl.BlockSpec((C2, K), lambda i: (0, 0)),
                      pl.BlockSpec((K, tm), lambda i: (0, i))],
            out_specs=[pl.BlockSpec((C2, tm), lambda i: (0, i)),
                       pl.BlockSpec((1, C2, 1), lambda i: (i, 0, 0)),
                       pl.BlockSpec((1, C2, 1), lambda i: (i, 0, 0))]),
        compiler_params=pltpu.CompilerParams(
            dimension_semantics=("parallel",),
            vmem_limit_bytes=_VMEM_LIMIT),
    )(w2t, p_t)

    # ---- Chan parallel-combine of per-(tile, phase) stats -> per-channel mean/var
    sums = part_sum[:, :, 0].reshape(T, s * s, Cout)
    m2s = part_m2[:, :, 0].reshape(T, s * s, Cout)
    n_t = jnp.clip(M - jnp.arange(T) * tm, 1, tm).astype(jnp.float32)   # valid cols/tile
    Mtot = float(N * OH * OW)
    mean_c = sums.sum(axis=(0, 1)) / Mtot
    g_mean = sums / n_t[:, None, None]
    dev = g_mean - mean_c[None, None, :]
    var_c = (m2s.sum(axis=(0, 1)) + (n_t[:, None, None] * dev * dev).sum(axis=(0, 1))) / Mtot
    var_c = jnp.maximum(var_c, 0.0)                                     # biased batch var
    # TODO(synk): running_mean / running_var buffers are not updated (training
    # forward uses batch stats, matching the PyTorch module's activation path).

    inv = gamma.astype(jnp.float32) / jnp.sqrt(var_c + eps)
    scale_col = jnp.tile(inv, s * s).reshape(C2, 1)
    shift_col = jnp.tile(beta.astype(jnp.float32) - mean_c * inv, s * s).reshape(C2, 1)

    # ---- stage 2: fused BN affine + ReLU on lane-dense [C2, tm] blocks -------
    out_t = pl.pallas_call(
        _bn_relu_kernel,
        out_shape=jax.ShapeDtypeStruct((C2, Mp), jnp.float32),
        grid_spec=pltpu.PrefetchScalarGridSpec(
            num_scalar_prefetch=0,
            grid=(T,),
            in_specs=[pl.BlockSpec((C2, tm), lambda i: (0, i)),
                      pl.BlockSpec((C2, 1), lambda i: (0, 0)),
                      pl.BlockSpec((C2, 1), lambda i: (0, 0))],
            out_specs=pl.BlockSpec((C2, tm), lambda i: (0, i))),
        compiler_params=pltpu.CompilerParams(
            dimension_semantics=("parallel",),
            vmem_limit_bytes=_VMEM_LIMIT),
    )(y_t, scale_col, shift_col)

    # ---- XLA glue: single permute back to NCHW -------------------------------
    # TODO(synk): keep the channel-major [C2, M] (or NHWC) layout for the
    # consumer to drop this final transpose pass; the module contract is NCHW.
    out6 = out_t[:, :M].reshape(s, s, Cout, N, Qh, Qw)
    return out6.transpose(3, 2, 4, 0, 5, 1).reshape(N, Cout, OH, OW)


# ------------------------- pure-JAX reference (sanity) -----------------------

def _reference(x, weight, gamma, beta, stride, padding, eps=1e-5):
    s, p = stride, padding
    Cin, Cout, kH, kW = weight.shape
    w_flip = weight[:, :, ::-1, ::-1]
    y = lax.conv_general_dilated(
        x, jnp.transpose(w_flip, (1, 0, 2, 3)),
        window_strides=(1, 1),
        padding=((kH - 1 - p, kH - 1 - p), (kW - 1 - p, kW - 1 - p)),
        lhs_dilation=(s, s),
        dimension_numbers=("NCHW", "OIHW", "NCHW"),
        precision=lax.Precision.HIGHEST)
    mean = y.mean(axis=(0, 2, 3), keepdims=True)
    var = y.var(axis=(0, 2, 3), keepdims=True)
    yn = (y - mean) / jnp.sqrt(var + eps) * gamma.reshape(1, -1, 1, 1) + beta.reshape(1, -1, 1, 1)
    return jnp.maximum(yn, 0.0)


if __name__ == "__main__":
    key = jax.random.PRNGKey(0)
    k1, k2, k3, k4 = jax.random.split(key, 4)

    # BasicDeconv2d(in_channels=4, out_channels=8, kernel_size=4, stride=2, padding=1, bias=False)
    N, Cin, H, W = 2, 4, 16, 16
    Cout, ksize, stride, padding = 8, 4, 2, 1

    x = jax.random.normal(k1, (N, Cin, H, W), jnp.float32)
    weight = 0.1 * jax.random.normal(k2, (Cin, Cout, ksize, ksize), jnp.float32)
    gamma = 1.0 + 0.1 * jax.random.normal(k3, (Cout,), jnp.float32)
    beta = 0.1 * jax.random.normal(k4, (Cout,), jnp.float32)

    run = jax.jit(functools.partial(basic_deconv2d, stride=stride, padding=padding))
    out = jax.block_until_ready(run(x, weight, gamma, beta))

    ref = _reference(x, weight, gamma, beta, stride, padding)
    np.testing.assert_allclose(np.asarray(out), np.asarray(ref), rtol=2e-2, atol=2e-2)

    print("KERNEL_OK")
</pallas_src>

<mosaic_0001>
module attributes {stable_mosaic.version = 11 : i64} {
  func.func @_deconv_stats_kernel(%arg0: i32, %arg1: memref<32x36xbf16, #tpu.memory_space<vmem>>, %arg2: memref<36x256xbf16, #tpu.memory_space<vmem>>, %arg3: memref<32x256xbf16, #tpu.memory_space<vmem>>, %arg4: memref<1x32x1xf32, #tpu.memory_space<vmem>>, %arg5: memref<1x32x1xf32, #tpu.memory_space<vmem>>) attributes {dimension_semantics = [#tpu.dimension_semantics<parallel>], iteration_bounds = array<i64: 2>, scalar_prefetch = 0 : i64, scratch_operands = 0 : i64, tpu.core_type = #tpu.core_type<tc>, window_params = [{pipeline_mode = #tpu.pipeline_mode<synchronous>, transform_indices = @transform_0, window_bounds = array<i64: 32, 36>}, {transform_indices = @transform_1, window_bounds = array<i64: 36, 256>}, {transform_indices = @transform_2, window_bounds = array<i64: 32, 256>}, {transform_indices = @transform_3, window_bounds = array<i64: 1, 32, 1>}, {transform_indices = @transform_4, window_bounds = array<i64: 1, 32, 1>}]} {
    %c0 = arith.constant 0 : index
    %c0_0 = arith.constant 0 : index
    %0 = vector.load %arg1[%c0, %c0_0] : memref<32x36xbf16, #tpu.memory_space<vmem>>, vector<32x36xbf16>
    %c0_1 = arith.constant 0 : index
    %c0_2 = arith.constant 0 : index
    %1 = vector.load %arg2[%c0_1, %c0_2] : memref<36x256xbf16, #tpu.memory_space<vmem>>, vector<36x256xbf16>
    %cst = arith.constant dense<0.000000e+00> : vector<32x256xf32>
    %2 = tpu.matmul %0, %1, %cst {dimension_numbers = #tpu.dot_dimension_numbers<[1], [0], [0], [1], [0, 0, 1, 1], [], []>} : vector<32x36xbf16>, vector<36x256xbf16>, vector<32x256xf32> -> vector<32x256xf32>
    %3 = arith.truncf %2 : vector<32x256xf32> to vector<32x256xbf16>
    %c0_3 = arith.constant 0 : index
    %c0_4 = arith.constant 0 : index
    %4 = vector.load %arg3[%c0_3, %c0_4] : memref<32x256xbf16, #tpu.memory_space<vmem>>, vector<32x256xbf16>
    tpu.vector_store %arg3[%c0_3, %c0_4], %3 {strides = array<i32>} : memref<32x256xbf16, #tpu.memory_space<vmem>>, vector<32x256xbf16>,
    %c256_i32 = arith.constant 256 : i32
    %5 = arith.muli %arg0, %c256_i32 : i32
    %6 = tpu.iota {dimensions = array<i32: 1>} : vector<1x256xi32>
    %7 = vector.broadcast %5 : i32 to vector<1x256xi32>
    %8 = arith.addi %7, %6 : vector<1x256xi32>
    %c512_i32 = arith.constant 512 : i32
    %9 = vector.broadcast %c512_i32 : i32 to vector<1x256xi32>
    %10 = arith.cmpi slt, %8, %9 : vector<1x256xi32>
    %11 = arith.extui %10 : vector<1x256xi1> to vector<1x256xi32>
    %12 = arith.sitofp %11 : vector<1x256xi32> to vector<1x256xf32>
    %cst_5 = arith.constant dense<0.000000e+00> : vector<1xf32>
    %13 = vector.multi_reduction <add>, %12, %cst_5 [1] : vector<1x256xf32> to vector<1xf32>
    %14 = vector.shape_cast %13 : vector<1xf32> to vector<1x1xf32>
    %cst_6 = arith.constant 1.000000e+00 : f32
    %15 = vector.broadcast %cst_6 : f32 to vector<1x1xf32>
    %16 = arith.maximumf %14, %15 : vector<1x1xf32>
    %cst_7 = arith.constant 0.000000e+00 : f32
    %17 = vector.shape_cast %10 : vector<1x256xi1> to vector<1x256xi1>
    %18 = vector.broadcast %17 : vector<1x256xi1> to vector<32x256xi1>
    %19 = vector.broadcast %cst_7 : f32 to vector<32x256xf32>
    %20 = arith.select %18, %2, %19 : vector<32x256xi1>, vector<32x256xf32>
    %cst_8 = arith.constant dense<0.000000e+00> : vector<32xf32>
    %21 = vector.multi_reduction <add>, %20, %cst_8 [1] : vector<32x256xf32> to vector<32xf32>
    %22 = vector.shape_cast %21 : vector<32xf32> to vector<32x1xf32>
    %23 = vector.broadcast %16 : vector<1x1xf32> to vector<32x1xf32>
    %24 = arith.divf %22, %23 : vector<32x1xf32>
    %25 = vector.broadcast %24 : vector<32x1xf32> to vector<32x256xf32>
    %26 = arith.subf %2, %25 : vector<32x256xf32>
    %cst_9 = arith.constant 0.000000e+00 : f32
    %27 = vector.shape_cast %10 : vector<1x256xi1> to vector<1x256xi1>
    %28 = vector.broadcast %27 : vector<1x256xi1> to vector<32x256xi1>
    %29 = vector.broadcast %cst_9 : f32 to vector<32x256xf32>
    %30 = arith.select %28, %26, %29 : vector<32x256xi1>, vector<32x256xf32>
    %31 = arith.mulf %30, %30 : vector<32x256xf32>
    %cst_10 = arith.constant dense<0.000000e+00> : vector<32xf32>
    %32 = vector.multi_reduction <add>, %31, %cst_10 [1] : vector<32x256xf32> to vector<32xf32>
    %33 = vector.shape_cast %32 : vector<32xf32> to vector<32x1xf32>
    %34 = vector.shape_cast %22 : vector<32x1xf32> to vector<1x32x1xf32>
    %c0_11 = arith.constant 0 : index
    %c0_12 = arith.constant 0 : index
    %c0_13 = arith.constant 0 : index
    %35 = vector.load %arg4[%c0_11, %c0_12, %c0_13] : memref<1x32x1xf32, #tpu.memory_space<vmem>>, vector<1x32x1xf32>
    tpu.vector_store %arg4[%c0_11, %c0_12, %c0_13], %34 {strides = array<i32>} : memref<1x32x1xf32, #tpu.memory_space<vmem>>, vector<1x32x1xf32>,
    %36 = vector.shape_cast %33 : vector<32x1xf32> to vector<1x32x1xf32>
    %c0_14 = arith.constant 0 : index
    %c0_15 = arith.constant 0 : index
    %c0_16 = arith.constant 0 : index
    %37 = vector.load %arg5[%c0_14, %c0_15, %c0_16] : memref<1x32x1xf32, #tpu.memory_space<vmem>>, vector<1x32x1xf32>
    tpu.vector_store %arg5[%c0_14, %c0_15, %c0_16], %36 {strides = array<i32>} : memref<1x32x1xf32, #tpu.memory_space<vmem>>, vector<1x32x1xf32>,
    return
  }
  func.func @transform_0(%arg0: i32) -> (i32, i32) {
    %c0_i32 = arith.constant 0 : i32
    %c0_i32_0 = arith.constant 0 : i32
    %c0_i32_1 = arith.constant 0 : i32
    return %c0_i32, %c0_i32_0 : i32, i32
  }
  func.func @transform_1(%arg0: i32) -> (i32, i32) {
    %c0_i32 = arith.constant 0 : i32
    %c0_i32_0 = arith.constant 0 : i32
    return %c0_i32, %arg0 : i32, i32
  }
  func.func @transform_2(%arg0: i32) -> (i32, i32) {
    %c0_i32 = arith.constant 0 : i32
    %c0_i32_0 = arith.constant 0 : i32
    return %c0_i32, %arg0 : i32, i32
  }
  func.func @transform_3(%arg0: i32) -> (i32, i32, i32) {
    %c0_i32 = arith.constant 0 : i32
    %c0_i32_0 = arith.constant 0 : i32
    %c0_i32_1 = arith.constant 0 : i32
    return %arg0, %c0_i32, %c0_i32_0 : i32, i32, i32
  }
  func.func @transform_4(%arg0: i32) -> (i32, i32, i32) {
    %c0_i32 = arith.constant 0 : i32
    %c0_i32_0 = arith.constant 0 : i32
    %c0_i32_1 = arith.constant 0 : i32
    return %arg0, %c0_i32, %c0_i32_0 : i32, i32, i32
  }
}

module attributes {stable_mosaic.version = 11 : i64} {
  func.func @_bn_relu_kernel(%arg0: i32, %arg1: memref<32x256xbf16, #tpu.memory_space<vmem>>, %arg2: memref<32x1xf32, #tpu.memory_space<vmem>>, %arg3: memref<32x1xf32, #tpu.memory_space<vmem>>, %arg4: memref<32x256xf32, #tpu.memory_space<vmem>>) attributes {dimension_semantics = [#tpu.dimension_semantics<parallel>], iteration_bounds = array<i64: 2>, scalar_prefetch = 0 : i64, scratch_operands = 0 : i64, tpu.core_type = #tpu.core_type<tc>, window_params = [{transform_indices = @transform_0, window_bounds = array<i64: 32, 256>}, {pipeline_mode = #tpu.pipeline_mode<synchronous>, transform_indices = @transform_1, window_bounds = array<i64: 32, 1>}, {pipeline_mode = #tpu.pipeline_mode<synchronous>, transform_indices = @transform_2, window_bounds = array<i64: 32, 1>}, {transform_indices = @transform_3, window_bounds = array<i64: 32, 256>}]} {
    %c0 = arith.constant 0 : index
    %c0_0 = arith.constant 0 : index
    %0 = vector.load %arg1[%c0, %c0_0] : memref<32x256xbf16, #tpu.memory_space<vmem>>, vector<32x256xbf16>
    %1 = arith.extf %0 : vector<32x256xbf16> to vector<32x256xf32>
    %c0_1 = arith.constant 0 : index
    %c0_2 = arith.constant 0 : index
    %2 = vector.load %arg2[%c0_1, %c0_2] : memref<32x1xf32, #tpu.memory_space<vmem>>, vector<32x1xf32>
    %3 = vector.broadcast %2 : vector<32x1xf32> to vector<32x256xf32>
    %4 = arith.mulf %1, %3 : vector<32x256xf32>
    %c0_3 = arith.constant 0 : index
    %c0_4 = arith.constant 0 : index
    %5 = vector.load %arg3[%c0_3, %c0_4] : memref<32x1xf32, #tpu.memory_space<vmem>>, vector<32x1xf32>
    %6 = vector.broadcast %5 : vector<32x1xf32> to vector<32x256xf32>
    %7 = arith.addf %4, %6 : vector<32x256xf32>
    %cst = arith.constant 0.000000e+00 : f32
    %8 = vector.broadcast %cst : f32 to vector<32x256xf32>
    %9 = arith.maximumf %7, %8 : vector<32x256xf32>
    %c0_5 = arith.constant 0 : index
    %c0_6 = arith.constant 0 : index
    %10 = vector.load %arg4[%c0_5, %c0_6] : memref<32x256xf32, #tpu.memory_space<vmem>>, vector<32x256xf32>
    tpu.vector_store %arg4[%c0_5, %c0_6], %9 {strides = array<i32>} : memref<32x256xf32, #tpu.memory_space<vmem>>, vector<32x256xf32>,
    return
  }
  func.func @transform_0(%arg0: i32) -> (i32, i32) {
    %c0_i32 = arith.constant 0 : i32
    %c0_i32_0 = arith.constant 0 : i32
    return %c0_i32, %arg0 : i32, i32
  }
  func.func @transform_1(%arg0: i32) -> (i32, i32) {
    %c0_i32 = arith.constant 0 : i32
    %c0_i32_0 = arith.constant 0 : i32
    %c0_i32_1 = arith.constant 0 : i32
    return %c0_i32, %c0_i32_0 : i32, i32
  }
  func.func @transform_2(%arg0: i32) -> (i32, i32) {
    %c0_i32 = arith.constant 0 : i32
    %c0_i32_0 = arith.constant 0 : i32
    %c0_i32_1 = arith.constant 0 : i32
    return %c0_i32, %c0_i32_0 : i32, i32
  }
  func.func @transform_3(%arg0: i32) -> (i32, i32) {
    %c0_i32 = arith.constant 0 : i32
    %c0_i32_0 = arith.constant 0 : i32
    return %c0_i32, %arg0 : i32, i32
  }
}

</mosaic_0001>

<llo_original>
// kernel: tile.0
$region0: #{tile.0}
  %s0 = inlined_call_operand.vmem [shape: f32[4,8], index: 0, kind: input, shape index: {}]
  %s1 = inlined_call_operand.vmem [shape: f32[32,1], index: 1, kind: output, shape index: {}]
  $region1: #{tile.0} parent=0
    #allocation0 [shape = 'u8[4096]{0}', space=vmem, size = 0x1000, scoped, tag = 'scoped mem for input reshape']
    %s3 = ssub.s32 16, 1
    %v4 = vld [vmem:[%s0] sm:%s3]
    %5 = vst [vmem:[#allocation0] sm:%s3] %v4
    %v6 = vld [vmem:[#allocation0] sm:$0xf]
    %vm7 = vcmask 7168
    %8 = vst.msk [vmem:[%s1] ss:$8 sm:$0xf] %vm7, %v6
    %v9 = vld [vmem:[#allocation0] sm:$0xf]
    %10 = vrot.lane.b32.xlu0 %v9, 127
    %v11 = vpop.permute.xlu0 %10
    %vm12 = vcmask 7168
    %s13 = scalar_lea.vmem %s1, 1
    %14 = vst.msk [vmem:[%s13] ss:$8 sm:$0xf] %vm12, %v11
    %v15 = vld [vmem:[#allocation0] sm:$0xf]
    %16 = vrot.lane.b32.xlu0 %v15, 126
    %v17 = vpop.permute.xlu0 %16
    %vm18 = vcmask 7168
    %s19 = scalar_lea.vmem %s1, 2
    %20 = vst.msk [vmem:[%s19] ss:$8 sm:$0xf] %vm18, %v17
    %v21 = vld [vmem:[#allocation0] sm:$0xf]
    %22 = vrot.lane.b32.xlu0 %v21, 125
    %v23 = vpop.permute.xlu0 %22
    %vm24 = vcmask 7168
    %s25 = scalar_lea.vmem %s1, 3
    %26 = vst.msk [vmem:[%s25] ss:$8 sm:$0xf] %vm24, %v23
    %v27 = vld [vmem:[#allocation0] sm:$0xf]
    %28 = vrot.lane.b32.xlu0 %v27, 124
    %v29 = vpop.permute.xlu0 %28
    %vm30 = vcmask 7168
    %s31 = scalar_lea.vmem %s1, 4
    %32 = vst.msk [vmem:[%s31] ss:$8 sm:$0xf] %vm30, %v29
    %v33 = vld [vmem:[#allocation0] sm:$0xf]
    %34 = vrot.lane.b32.xlu0 %v33, 123
    %v35 = vpop.permute.xlu0 %34
    %vm36 = vcmask 7168
    %s37 = scalar_lea.vmem %s1, 5
    %38 = vst.msk [vmem:[%s37] ss:$8 sm:$0xf] %vm36, %v35
    %v39 = vld [vmem:[#allocation0] sm:$0xf]
    %40 = vrot.lane.b32.xlu0 %v39, 122
    %v41 = vpop.permute.xlu0 %40
    %vm42 = vcmask 7168
    %s43 = scalar_lea.vmem %s1, 6
    %44 = vst.msk [vmem:[%s43] ss:$8 sm:$0xf] %vm42, %v41
    %v45 = vld [vmem:[#allocation0] sm:$0xf]
    %46 = vrot.lane.b32.xlu0 %v45, 121
    %v47 = vpop.permute.xlu0 %46
    %vm48 = vcmask 7168
    %s49 = scalar_lea.vmem %s1, 7
    %50 = vst.msk [vmem:[%s49] ss:$8 sm:$0xf] %vm48, %v47

// kernel: basic_deconv2d.3
$region0: #{basic_deconv2d.3}
  #allocation0 [shape = 'u32[]', space=smem, size = 0x4, offset = 0x4, fixed_abs, tag = 'smem constant byte address 0x4 - core index']
  #allocation1 [shape = 'u32[72,128]{1,0:T(1,128)}', space=vmem, size = 0x9000, scoped, tag = 'internal scratch']
  %s0 = inlined_call_operand.vmem [shape: bf16[32,512], index: 0, kind: input, shape index: {}]
  %s1 = inlined_call_operand.vmem [shape: f32[32,1], index: 1, kind: input, shape index: {}]
  %s2 = inlined_call_operand.vmem [shape: f32[32,1], index: 2, kind: input, shape index: {}]
  %s3 = inlined_call_operand.vmem [shape: f32[32,512], index: 3, kind: output, shape index: {}]
  %s4 = sld [smem:[#allocation0]]
  $region102: #{basic_deconv2d.3} parent=0
    _
  %s6 = ssub.s32 1, %s4
  %s7 = scalar_select 0, %s6, %s4
  $region1: #{basic_deconv2d.3} parent=0
    #allocation2 [shape = 'u8[32768]{0}', space=vmem, size = 0x8000, scoped, tag = 'input window, operand 0']
    #allocation3 [shape = 'u8[65536]{0}', space=vmem, size = 0x10000, scoped, tag = 'output window, operand 0']
    loop: start=0, step=1, limit=4
    $region2: #{basic_deconv2d.3} parent=1 // loop_pre_header
      _
    $region3: #{basic_deconv2d.3} parent=1 // loop_header
      %s9 = sphi 0, %s13
      %p10 = scmp.ge.s32.totalorder %s9, 4
      %s19 = sphi 0, %s21
      %s22 = sphi 0, %s19
      %s23 = sphi 0, %s22
      %s39 = sphi 0, %s23
      %s43 = sphi 0, %s43
      %s45 = sphi 0, %s43
      %s46 = sphi 0, %s45
      %s60 = sphi 0, %s46
      %s64 = sphi 0, %s64
      %s66 = sphi 0, %s64
      %s67 = sphi 0, %s66
      %s81 = sphi 0, %s67
      %s87 = sphi 0, %s89
      %s90 = sphi 0, %s87
      %s91 = sphi 0, %s90
      %s107 = sphi 0, %s91
    $region4: #{basic_deconv2d.3} parent=1 // loop_header_branch
      %12 = sbr.rel (%p10) target = $region8
    $region5: #{basic_deconv2d.3} parent=1 // loop_body
      %s14 = ssub.s32 %s9, 1
      %s15 = ssub.s32 %s9, 2
      %s16 = sadd.s32 %s9, 1
      %s17 = ssub.s32 %s9, %s16
      %p18 = scmp.eq.s32.totalorder %s17, 0
      %s20 = sadd.s32 %s19, 1
      %s21 = scalar_select %p18, %s19, %s20
      %p24 = pneg %p18
      %p25 = scmp.eq.s32.totalorder %s9, 1
      %p26 = por %p24, %p25
      %p27 = scmp.ne.s32.totalorder %s19, %s22
      %p28 = scmp.eq.s32.totalorder %s9, 0
      %p29 = por %p27, %p28
      %p30 = scmp.ne.s32.totalorder %s19, %s22
      %p31 = scmp.eq.s32.totalorder %s14, 1
      %p32 = por %p30, %p31
      %p33 = scmp.ne.s32.totalorder %s22, %s23
      %p34 = scmp.eq.s32.totalorder %s14, 0
      %p35 = por %p33, %p34
      %p36 = scmp.ne.s32.totalorder %s22, %s23
      %p37 = scmp.eq.s32.totalorder %s15, 1
      %p38 = por %p36, %p37
      %p40 = scmp.ne.s32.totalorder %s23, %s39
      %p41 = scmp.eq.s32.totalorder %s15, 0
      %p42 = por %p40, %p41
      %s44 = sadd.s32 %s43, 1
      %p47 = scmp.eq.s32.totalorder %s9, 1
      %p48 = scmp.ne.s32.totalorder %s43, %s45
      %p49 = scmp.eq.s32.totalorder %s9, 0
      %p50 = por %p48, %p49
      %p51 = scmp.ne.s32.totalorder %s43, %s45
      %p52 = scmp.eq.s32.totalorder %s14, 1
      %p53 = por %p51, %p52
      %p54 = scmp.ne.s32.totalorder %s45, %s46
      %p55 = scmp.eq.s32.totalorder %s14, 0
      %p56 = por %p54, %p55
      %p57 = scmp.ne.s32.totalorder %s45, %s46
      %p58 = scmp.eq.s32.totalorder %s15, 1
      %p59 = por %p57, %p58
      %p61 = scmp.ne.s32.totalorder %s46, %s60
      %p62 = scmp.eq.s32.totalorder %s15, 0
      %p63 = por %p61, %p62
      %s65 = sadd.s32 %s64, 1
      %p68 = scmp.eq.s32.totalorder %s9, 1
      %p69 = scmp.ne.s32.totalorder %s64, %s66
      %p70 = scmp.eq.s32.totalorder %s9, 0
      %p71 = por %p69, %p70
      %p72 = scmp.ne.s32.totalorder %s64, %s66
      %p73 = scmp.eq.s32.totalorder %s14, 1
      %p74 = por %p72, %p73
      %p75 = scmp.ne.s32.totalorder %s66, %s67
      %p76 = scmp.eq.s32.totalorder %s14, 0
      %p77 = por %p75, %p76
      %p78 = scmp.ne.s32.totalorder %s66, %s67
      %p79 = scmp.eq.s32.totalorder %s15, 1
      %p80 = por %p78, %p79
      %p82 = scmp.ne.s32.totalorder %s67, %s81
      %p83 = scmp.eq.s32.totalorder %s15, 0
      %p84 = por %p82, %p83
      %s85 = ssub.s32 %s9, %s16
      %p86 = scmp.eq.s32.totalorder %s85, 0
      %s88 = sadd.s32 %s87, 1
      %s89 = scalar_select %p86, %s87, %s88
      %p92 = pneg %p86
      %p93 = scmp.eq.s32.totalorder %s9, 1
      %p94 = por %p92, %p93
      %p95 = scmp.ne.s32.totalorder %s87, %s90
      %p96 = scmp.eq.s32.totalorder %s9, 0
      %p97 = por %p95, %p96
      %p98 = scmp.ne.s32.totalorder %s87, %s90
      %p99 = scmp.eq.s32.totalorder %s14, 1
      %p100 = por %p98, %p99
      %p101 = scmp.ne.s32.totalorder %s90, %s91
      %p102 = scmp.eq.s32.totalorder %s14, 0
      %p103 = por %p101, %p102
      %p104 = scmp.ne.s32.totalorder %s90, %s91
      %p105 = scmp.eq.s32.totalorder %s15, 1
      %p106 = por %p104, %p105
      %p108 = scmp.ne.s32.totalorder %s91, %s107
      %p109 = scmp.eq.s32.totalorder %s15, 0
      %p110 = por %p108, %p109
      %p111 = scmp.le.s32.totalorder 1, %s9
      %p112 = scmp.lt.s32.totalorder %s9, 3
      %p113 = pnand %p111, %p112
      %p114 = pneg %p113
      // Predicated region
      $region9: #{basic_deconv2d.3} parent=5 // pred_check
        _
      $region10: #{basic_deconv2d.3} parent=5 // pred_check_branch
        %116 = sbr.rel (%p113) target = $region12
      $region11: #{basic_deconv2d.3} parent=5 // pred_region
        %s117 = ssub.s32 %s9, 1
        // Predicated region
        $region13: #{basic_deconv2d.3} parent=11 // pred_check
          %p118 = pneg %p56
        $region14: #{basic_deconv2d.3} parent=11 // pred_check_branch
          %120 = sbr.rel (%p118) target = $region16
        $region15: #{basic_deconv2d.3} parent=11 // pred_region
          _
        $region16: #{basic_deconv2d.3} parent=11 // pred_fallthru
          _
        // Predicated region
        $region17: #{basic_deconv2d.3} parent=11 // pred_check
          %p121 = pneg %p77
        $region18: #{basic_deconv2d.3} parent=11 // pred_check_branch
          %123 = sbr.rel (%p121) target = $region20
        $region19: #{basic_deconv2d.3} parent=11 // pred_region
          _
        $region20: #{basic_deconv2d.3} parent=11 // pred_fallthru
          _
      $region12: #{basic_deconv2d.3} parent=5 // pred_fallthru
        _
      %p124 = scmp.lt.s32.totalorder %s9, 2
      // Predicated region
      $region21: #{basic_deconv2d.3} parent=5 // pred_check
        %p125 = pneg %p124
      $region22: #{basic_deconv2d.3} parent=5 // pred_check_branch
        %127 = sbr.rel (%p125) target = $region24
      $region23: #{basic_deconv2d.3} parent=5 // pred_region
        // Predicated region
        $region25: #{basic_deconv2d.3} parent=23 // pred_check
          %p128 = pneg %p29
        $region26: #{basic_deconv2d.3} parent=23 // pred_check_branch
          %130 = sbr.rel (%p128) target = $region28
        $region27: #{basic_deconv2d.3} parent=23 // pred_region
          %s131 = sand.u32 %s19, 1
          %s132 = sand.u32 %s19, 1
          %s133 = smul.addr %s132, 32
          %s134 = scalar_lea.vmem [#allocation2], %s133
          %s135 = smul.u32 2, %s9
          %s136 = smul.addr %s135, 4
          %s137 = scalar_lea.vmem %s0, %s136
          // Predicated region
          $region29: #{basic_deconv2d.3} parent=27 // pred_check
            _
          $region30: #{basic_deconv2d.3} parent=27 // pred_check_branch
            %139 = sbr.rel (0) target = $region32
          $region31: #{basic_deconv2d.3} parent=27 // pred_region
            // Predicated region
            $region33: #{basic_deconv2d.3} parent=31 // pred_check
              _
            $region34: #{basic_deconv2d.3} parent=31 // pred_check_branch
              %141 = sbr.rel (0) target = $region36
            $region35: #{basic_deconv2d.3} parent=31 // pred_region
              // Predicated region
              $region48: #{basic_deconv2d.3} parent=35 // pred_check
                _
              $region49: #{basic_deconv2d.3} parent=35 // pred_check_branch
                %163 = sbr.rel (0) target = $region51
              $region50: #{basic_deconv2d.3} parent=35 // pred_region
                loop: start=0, step=1, limit=1
                $region52: #{basic_deconv2d.3} parent=50 // loop_pre_header
                  _
                $region53: #{basic_deconv2d.3} parent=50 // loop_header
                  %s165 = sphi 0, %s169
                  %p166 = scmp.ge.s32.totalorder %s165, 1
                  %s170 = sphi %s137, %s137
                  %s171 = sphi %s134, %s134
                $region54: #{basic_deconv2d.3} parent=50 // loop_header_branch
                  %168 = sbr.rel (%p166) target = $region58
                $region55: #{basic_deconv2d.3} parent=50 // loop_body
                  %v172 = vld [vmem:[%s170] sm:$0xff]
                  %173 = vst [vmem:[%s171] sm:$0xff] %v172
                  %v174 = vld [vmem:[%s170 + $0x10] sm:$0xff]
                  %175 = vst [vmem:[%s171 + $0x8] sm:$0xff] %v174
                  %v176 = vld [vmem:[%s170 + $0x20] sm:$0xff]
                  %177 = vst [vmem:[%s171 + $0x10] sm:$0xff] %v176
                  %v178 = vld [vmem:[%s170 + $0x30] sm:$0xff]
                  %179 = vst [vmem:[%s171 + $0x18] sm:$0xff] %v178
                $region56: #{basic_deconv2d.3} parent=50 // loop_footer
                  %s169 = sadd.s32 1, %s165
                $region57: #{basic_deconv2d.3} parent=50 // loop_footer_branch
                  %164 = sbr.rel target = $region53
                $region58: #{basic_deconv2d.3} parent=50 // loop_exit
                  _
              $region51: #{basic_deconv2d.3} parent=35 // pred_fallthru
                _
              // Predicated region
              $region59: #{basic_deconv2d.3} parent=35 // pred_check
                _
              $region60: #{basic_deconv2d.3} parent=35 // pred_check_branch
                %181 = sbr.rel target = $region62
              $region61: #{basic_deconv2d.3} parent=35 // pred_region
                _
              $region62: #{basic_deconv2d.3} parent=35 // pred_fallthru
                _
            $region36: #{basic_deconv2d.3} parent=31 // pred_fallthru
              _
            // Predicated region
            $region37: #{basic_deconv2d.3} parent=31 // pred_check
              _
            $region38: #{basic_deconv2d.3} parent=31 // pred_check_branch
              %143 = sbr.rel target = $region40
            $region39: #{basic_deconv2d.3} parent=31 // pred_region
              %s145 = ssub.s32 256, 1
              loop: start=0, step=1, limit=1
              $region41: #{basic_deconv2d.3} parent=39 // loop_pre_header
                _
              $region42: #{basic_deconv2d.3} parent=39 // loop_header
                %s147 = sphi 0, %s151
                %p148 = scmp.ge.s32.totalorder %s147, 1
                %s152 = sphi %s137, %s137
                %s153 = sphi %s134, %s134
              $region43: #{basic_deconv2d.3} parent=39 // loop_header_branch
                %150 = sbr.rel (%p148) target = $region47
              $region44: #{basic_deconv2d.3} parent=39 // loop_body
                %v154 = vld [vmem:[%s152] sm:%s145]
                %155 = vst [vmem:[%s153] sm:%s145] %v154
                %v156 = vld [vmem:[%s152 + $0x10] sm:%s145]
                %157 = vst [vmem:[%s153 + $0x8] sm:%s145] %v156
                %v158 = vld [vmem:[%s152 + $0x20] sm:%s145]
                %159 = vst [vmem:[%s153 + $0x10] sm:%s145] %v158
                %v160 = vld [vmem:[%s152 + $0x30] sm:%s145]
                %161 = vst [vmem:[%s153 + $0x18] sm:%s145] %v160
              $region45: #{basic_deconv2d.3} parent=39 // loop_footer
                %s151 = sadd.s32 1, %s147
              $region46: #{basic_deconv2d.3} parent=39 // loop_footer_branch
                %146 = sbr.rel target = $region42
              $region47: #{basic_deconv2d.3} parent=39 // loop_exit
                _
            $region40: #{basic_deconv2d.3} parent=31 // pred_fallthru
              _
          $region32: #{basic_deconv2d.3} parent=27 // pred_fallthru
            _
          %182 = vnop
        $region28: #{basic_deconv2d.3} parent=23 // pred_fallthru
          _
      $region24: #{basic_deconv2d.3} parent=5 // pred_fallthru
        _
      %p183 = scmp.le.s32.totalorder 1, %s9
      %p184 = scmp.lt.s32.totalorder %s9, 3
      %p185 = pnand %p183, %p184
      %p186 = pneg %p185
      // Predicated region
      $region63: #{basic_deconv2d.3} parent=5 // pred_check
        _
      $region64: #{basic_deconv2d.3} parent=5 // pred_check_branch
        %188 = sbr.rel (%p185) target = $region66
      $region65: #{basic_deconv2d.3} parent=5 // pred_region
        %s189 = ssub.s32 %s9, 1
        %s190 = sand.u32 %s22, 1
        %s191 = sand.u32 %s22, 1
        %s192 = smul.addr %s191, 32
        %s193 = scalar_lea.vmem [#allocation2], %s192
        // Predicated region
        $region67: #{basic_deconv2d.3} parent=65 // pred_check
          %p194 = pneg %p35
        $region68: #{basic_deconv2d.3} parent=65 // pred_check_branch
          %196 = sbr.rel (%p194) target = $region70
        $region69: #{basic_deconv2d.3} parent=65 // pred_region
          _
        $region70: #{basic_deconv2d.3} parent=65 // pred_fallthru
          _
        %s197 = sand.u32 %s22, 1
        %s198 = sand.u32 %s22, 1
        %s199 = smul.addr %s198, 32
        %s200 = scalar_lea.vmem [#allocation2], %s199
        %p201 = pneg %p35
        %p202 = pneg %p32
        %p203 = pneg %p56
        %p204 = pneg %p53
        %p205 = pneg %p77
        %p206 = pneg %p74
        %p207 = pneg %p103
        %p208 = pneg %p100
        %s209 = sand.u32 %s90, 1
        %s210 = sand.u32 %s90, 1
        %s211 = smul.addr %s210, 64
        %s212 = scalar_lea.vmem [#allocation3], %s211
        %s213 = smul.u32 2, %s14
        %s214 = smul.u32 2, %s14
        %v215 = vld [vmem:[%s193] sm:$0xff]
        %v216 = vld [vmem:[%s193 + $0x8] sm:$0xff]
        %v217 = vld [vmem:[%s193 + $0x10] sm:$0xff]
        %v218 = vld [vmem:[%s193 + $0x18] sm:$0xff]
        %v219 = vunpack.c.l.bf16 %v215
        %v220 = vunpack.c.h.bf16 %v215
        %v221 = vunpack.c.l.bf16 %v216
        %v222 = vunpack.c.h.bf16 %v216
        %v223 = vunpack.c.l.bf16 %v217
        %v224 = vunpack.c.h.bf16 %v217
        %v225 = vunpack.c.l.bf16 %v218
        %v226 = vunpack.c.h.bf16 %v218
        %v227 = vld [vmem:[%s1] sm:$0xff]
        %v228 = vld [vmem:[%s1 + $0x8] sm:$0xff]
        %v229 = vld [vmem:[%s1 + $0x10] sm:$0xff]
        %v230 = vld [vmem:[%s1 + $0x18] sm:$0xff]
        %232 = vset.pattern.permute.xlu0 0
        %233 = vperm.xlu0 %232, %v227
        %v234 = vpop.permute.xlu0 %233
        %237 = vset.pattern.permute.xlu0 0
        %238 = vperm.xlu0 %237, %v228
        %v239 = vpop.permute.xlu0 %238
        %242 = vset.pattern.permute.xlu0 0
        %243 = vperm.xlu0 %242, %v229
        %v244 = vpop.permute.xlu0 %243
        %247 = vset.pattern.permute.xlu0 0
        %248 = vperm.xlu0 %247, %v230
        %v249 = vpop.permute.xlu0 %248
        %v251 = vmul.f32 %v219, %v234
        %v252 = vmul.f32 %v220, %v234
        %v253 = vmul.f32 %v221, %v239
        %v254 = vmul.f32 %v222, %v239
        %v255 = vmul.f32 %v223, %v244
        %v256 = vmul.f32 %v224, %v244
        %v257 = vmul.f32 %v225, %v249
        %v258 = vmul.f32 %v226, %v249
        %v259 = vld [vmem:[%s2] sm:$0xff]
        %v260 = vld [vmem:[%s2 + $0x8] sm:$0xff]
        %v261 = vld [vmem:[%s2 + $0x10] sm:$0xff]
        %v262 = vld [vmem:[%s2 + $0x18] sm:$0xff]
        %264 = vset.pattern.permute.xlu0 0
        %265 = vperm.xlu0 %264, %v259
        %v266 = vpop.permute.xlu0 %265
        %269 = vset.pattern.permute.xlu0 0
        %270 = vperm.xlu0 %269, %v260
        %v271 = vpop.permute.xlu0 %270
        %274 = vset.pattern.permute.xlu0 0
        %275 = vperm.xlu0 %274, %v261
        %v276 = vpop.permute.xlu0 %275
        %279 = vset.pattern.permute.xlu0 0
        %280 = vperm.xlu0 %279, %v262
        %v281 = vpop.permute.xlu0 %280
        %v283 = vadd.f32 %v251, %v266
        %v284 = vadd.f32 %v252, %v266
        %v285 = vadd.f32 %v253, %v271
        %v286 = vadd.f32 %v254, %v271
        %v287 = vadd.f32 %v255, %v276
        %v288 = vadd.f32 %v256, %v276
        %v289 = vadd.f32 %v257, %v281
        %v290 = vadd.f32 %v258, %v281
        %v291 = vmax.f32 %v283, 0.0
        %v292 = vmax.f32 %v284, 0.0
        %v293 = vmax.f32 %v285, 0.0
        %v294 = vmax.f32 %v286, 0.0
        %v295 = vmax.f32 %v287, 0.0
        %v296 = vmax.f32 %v288, 0.0
        %v297 = vmax.f32 %v289, 0.0
        %v298 = vmax.f32 %v290, 0.0
        %299 = vst [vmem:[%s212] sm:$0xff] %v291
        %300 = vst [vmem:[%s212 + $0x8] sm:$0xff] %v292
        %301 = vst [vmem:[%s212 + $0x10] sm:$0xff] %v293
        %302 = vst [vmem:[%s212 + $0x18] sm:$0xff] %v294
        %303 = vst [vmem:[%s212 + $0x20] sm:$0xff] %v295
        %304 = vst [vmem:[%s212 + $0x28] sm:$0xff] %v296
        %305 = vst [vmem:[%s212 + $0x30] sm:$0xff] %v297
        %306 = vst [vmem:[%s212 + $0x38] sm:$0xff] %v298
        %s307 = sand.u32 %s90, 1
        %s308 = sand.u32 %s90, 1
        %s309 = smul.addr %s308, 64
        %s310 = scalar_lea.vmem [#allocation3], %s309
        // Predicated region
        $region71: #{basic_deconv2d.3} parent=65 // pred_check
          %p311 = pneg %p100
        $region72: #{basic_deconv2d.3} parent=65 // pred_check_branch
          %313 = sbr.rel (%p311) target = $region74
        $region73: #{basic_deconv2d.3} parent=65 // pred_region
          %s314 = smul.u32 2, %s14
          %s315 = smul.addr %s314, 8
          %s316 = scalar_lea.vmem %s3, %s315
          // Predicated region
          $region75: #{basic_deconv2d.3} parent=73 // pred_check
            _
          $region76: #{basic_deconv2d.3} parent=73 // pred_check_branch
            %318 = sbr.rel (0) target = $region78
          $region77: #{basic_deconv2d.3} parent=73 // pred_region
            // Predicated region
            $region79: #{basic_deconv2d.3} parent=77 // pred_check
              _
            $region80: #{basic_deconv2d.3} parent=77 // pred_check_branch
              %320 = sbr.rel (0) target = $region82
            $region81: #{basic_deconv2d.3} parent=77 // pred_region
              loop: start=0, step=1, limit=1
              $region83: #{basic_deconv2d.3} parent=81 // loop_pre_header
                _
              $region84: #{basic_deconv2d.3} parent=81 // loop_header
                %s322 = sphi 0, %s326
                %p323 = scmp.ge.s32.totalorder %s322, 1
                %s327 = sphi %s310, %s310
                %s328 = sphi %s316, %s316
              $region85: #{basic_deconv2d.3} parent=81 // loop_header_branch
                %325 = sbr.rel (%p323) target = $region89
              $region86: #{basic_deconv2d.3} parent=81 // loop_body
                %v329 = vld [vmem:[%s327] sm:$0xff]
                %330 = vst [vmem:[%s328] sm:$0xff] %v329
                %v331 = vld [vmem:[%s327 + $0x8] sm:$0xff]
                %332 = vst [vmem:[%s328 + $0x8] sm:$0xff] %v331
                %v333 = vld [vmem:[%s327 + $0x10] sm:$0xff]
                %334 = vst [vmem:[%s328 + $0x20] sm:$0xff] %v333
                %v335 = vld [vmem:[%s327 + $0x18] sm:$0xff]
                %336 = vst [vmem:[%s328 + $0x28] sm:$0xff] %v335
                %v337 = vld [vmem:[%s327 + $0x20] sm:$0xff]
                %338 = vst [vmem:[%s328 + $0x40] sm:$0xff] %v337
                %v339 = vld [vmem:[%s327 + $0x28] sm:$0xff]
                %340 = vst [vmem:[%s328 + $0x48] sm:$0xff] %v339
                %v341 = vld [vmem:[%s327 + $0x30] sm:$0xff]
                %342 = vst [vmem:[%s328 + $0x60] sm:$0xff] %v341
                %v343 = vld [vmem:[%s327 + $0x38] sm:$0xff]
                %344 = vst [vmem:[%s328 + $0x68] sm:$0xff] %v343
              $region87: #{basic_deconv2d.3} parent=81 // loop_footer
                %s326 = sadd.s32 1, %s322
              $region88: #{basic_deconv2d.3} parent=81 // loop_footer_branch
                %321 = sbr.rel target = $region84
              $region89: #{basic_deconv2d.3} parent=81 // loop_exit
                _
            $region82: #{basic_deconv2d.3} parent=77 // pred_fallthru
              _
            // Predicated region
            $region90: #{basic_deconv2d.3} parent=77 // pred_check
              _
            $region91: #{basic_deconv2d.3} parent=77 // pred_check_branch
              %346 = sbr.rel target = $region93
            $region92: #{basic_deconv2d.3} parent=77 // pred_region
              _
            $region93: #{basic_deconv2d.3} parent=77 // pred_fallthru
              _
          $region78: #{basic_deconv2d.3} parent=73 // pred_fallthru
            _
          %347 = vnop
        $region74: #{basic_deconv2d.3} parent=65 // pred_fallthru
          _
      $region66: #{basic_deconv2d.3} parent=5 // pred_fallthru
        _
      %p348 = scmp.le.s32.totalorder 2, %s9
      // Predicated region
      $region94: #{basic_deconv2d.3} parent=5 // pred_check
        %p349 = pneg %p348
      $region95: #{basic_deconv2d.3} parent=5 // pred_check_branch
        %351 = sbr.rel (%p349) target = $region97
      $region96: #{basic_deconv2d.3} parent=5 // pred_region
        %s352 = ssub.s32 %s9, 2
        // Predicated region
        $region98: #{basic_deconv2d.3} parent=96 // pred_check
          %p353 = pneg %p106
        $region99: #{basic_deconv2d.3} parent=96 // pred_check_branch
          %355 = sbr.rel (%p353) target = $region101
        $region100: #{basic_deconv2d.3} parent=96 // pred_region
          %s356 = sand.u32 %s91, 1
          %s357 = sand.u32 %s91, 1
          %s358 = smul.addr %s357, 64
          %s359 = scalar_lea.vmem [#allocation3], %s358
        $region101: #{basic_deconv2d.3} parent=96 // pred_fallthru
          _
      $region97: #{basic_deconv2d.3} parent=5 // pred_fallthru
        _
    $region6: #{basic_deconv2d.3} parent=1 // loop_footer
      %s13 = sadd.s32 1, %s9
    $region7: #{basic_deconv2d.3} parent=1 // loop_footer_branch
      %8 = sbr.rel target = $region3
    $region8: #{basic_deconv2d.3} parent=1 // loop_exit
      _

// kernel: basic_deconv2d.2
$region0: #{basic_deconv2d.2}
  #allocation0 [shape = 'u32[]', space=smem, size = 0x4, offset = 0x4, fixed_abs, tag = 'smem constant byte address 0x4 - core index']
  #allocation1 [shape = 'u32[72,128]{1,0:T(1,128)}', space=vmem, size = 0x9000, scoped, tag = 'internal scratch']
  %s0 = inlined_call_operand.vmem [shape: bf16[32,36], index: 0, kind: input, shape index: {}]
  %s1 = inlined_call_operand.vmem [shape: bf16[36,512], index: 1, kind: input, shape index: {}]
  %s2 = inlined_call_operand.vmem [shape: bf16[32,512], index: 2, kind: output, shape index: {0}]
  %s3 = inlined_call_operand.vmem [shape: f32[2,32,1], index: 3, kind: output, shape index: {1}]
  %s4 = inlined_call_operand.vmem [shape: f32[2,32,1], index: 4, kind: output, shape index: {2}]
  %5 = xla_tuple %s2, %s3, %s4
  %s6 = sld [smem:[#allocation0]]
  $region129: #{basic_deconv2d.2} parent=0
    _
  %s8 = ssub.s32 1, %s6
  %s9 = scalar_select 0, %s8, %s6
  $region1: #{basic_deconv2d.2} parent=0
    #allocation2 [shape = 'u8[40960]{0}', space=vmem, size = 0xa000, scoped, tag = 'input window, operand 1']
    #allocation3 [shape = 'u8[32768]{0}', space=vmem, size = 0x8000, scoped, tag = 'output window, operand 0']
    loop: start=0, step=1, limit=4
    $region2: #{basic_deconv2d.2} parent=1 // loop_pre_header
      _
    $region3: #{basic_deconv2d.2} parent=1 // loop_header
      %s11 = sphi 0, %s15
      %p12 = scmp.ge.s32.totalorder %s11, 4
      %s19 = sphi 0, %s19
      %s21 = sphi 0, %s19
      %s22 = sphi 0, %s21
      %s36 = sphi 0, %s22
      %s42 = sphi 0, %s44
      %s45 = sphi 0, %s42
      %s46 = sphi 0, %s45
      %s62 = sphi 0, %s46
      %s68 = sphi 0, %s70
      %s71 = sphi 0, %s68
      %s72 = sphi 0, %s71
      %s88 = sphi 0, %s72
      %s94 = sphi 0, %s96
      %s97 = sphi 0, %s94
      %s98 = sphi 0, %s97
      %s114 = sphi 0, %s98
      %s120 = sphi 0, %s122
      %s123 = sphi 0, %s120
      %s124 = sphi 0, %s123
      %s140 = sphi 0, %s124
    $region4: #{basic_deconv2d.2} parent=1 // loop_header_branch
      %14 = sbr.rel (%p12) target = $region8
    $region5: #{basic_deconv2d.2} parent=1 // loop_body
      %s16 = ssub.s32 %s11, 1
      %s17 = ssub.s32 %s11, 2
      %s18 = sadd.s32 %s11, 1
      %s20 = sadd.s32 %s19, 1
      %p23 = scmp.eq.s32.totalorder %s11, 1
      %p24 = scmp.ne.s32.totalorder %s19, %s21
      %p25 = scmp.eq.s32.totalorder %s11, 0
      %p26 = por %p24, %p25
      %p27 = scmp.ne.s32.totalorder %s19, %s21
      %p28 = scmp.eq.s32.totalorder %s16, 1
      %p29 = por %p27, %p28
      %p30 = scmp.ne.s32.totalorder %s21, %s22
      %p31 = scmp.eq.s32.totalorder %s16, 0
      %p32 = por %p30, %p31
      %p33 = scmp.ne.s32.totalorder %s21, %s22
      %p34 = scmp.eq.s32.totalorder %s17, 1
      %p35 = por %p33, %p34
      %p37 = scmp.ne.s32.totalorder %s22, %s36
      %p38 = scmp.eq.s32.totalorder %s17, 0
      %p39 = por %p37, %p38
      %s40 = ssub.s32 %s11, %s18
      %p41 = scmp.eq.s32.totalorder %s40, 0
      %s43 = sadd.s32 %s42, 1
      %s44 = scalar_select %p41, %s42, %s43
      %p47 = pneg %p41
      %p48 = scmp.eq.s32.totalorder %s11, 1
      %p49 = por %p47, %p48
      %p50 = scmp.ne.s32.totalorder %s42, %s45
      %p51 = scmp.eq.s32.totalorder %s11, 0
      %p52 = por %p50, %p51
      %p53 = scmp.ne.s32.totalorder %s42, %s45
      %p54 = scmp.eq.s32.totalorder %s16, 1
      %p55 = por %p53, %p54
      %p56 = scmp.ne.s32.totalorder %s45, %s46
      %p57 = scmp.eq.s32.totalorder %s16, 0
      %p58 = por %p56, %p57
      %p59 = scmp.ne.s32.totalorder %s45, %s46
      %p60 = scmp.eq.s32.totalorder %s17, 1
      %p61 = por %p59, %p60
      %p63 = scmp.ne.s32.totalorder %s46, %s62
      %p64 = scmp.eq.s32.totalorder %s17, 0
      %p65 = por %p63, %p64
      %s66 = ssub.s32 %s11, %s18
      %p67 = scmp.eq.s32.totalorder %s66, 0
      %s69 = sadd.s32 %s68, 1
      %s70 = scalar_select %p67, %s68, %s69
      %p73 = pneg %p67
      %p74 = scmp.eq.s32.totalorder %s11, 1
      %p75 = por %p73, %p74
      %p76 = scmp.ne.s32.totalorder %s68, %s71
      %p77 = scmp.eq.s32.totalorder %s11, 0
      %p78 = por %p76, %p77
      %p79 = scmp.ne.s32.totalorder %s68, %s71
      %p80 = scmp.eq.s32.totalorder %s16, 1
      %p81 = por %p79, %p80
      %p82 = scmp.ne.s32.totalorder %s71, %s72
      %p83 = scmp.eq.s32.totalorder %s16, 0
      %p84 = por %p82, %p83
      %p85 = scmp.ne.s32.totalorder %s71, %s72
      %p86 = scmp.eq.s32.totalorder %s17, 1
      %p87 = por %p85, %p86
      %p89 = scmp.ne.s32.totalorder %s72, %s88
      %p90 = scmp.eq.s32.totalorder %s17, 0
      %p91 = por %p89, %p90
      %s92 = ssub.s32 %s11, %s18
      %p93 = scmp.eq.s32.totalorder %s92, 0
      %s95 = sadd.s32 %s94, 1
      %s96 = scalar_select %p93, %s94, %s95
      %p99 = pneg %p93
      %p100 = scmp.eq.s32.totalorder %s11, 1
      %p101 = por %p99, %p100
      %p102 = scmp.ne.s32.totalorder %s94, %s97
      %p103 = scmp.eq.s32.totalorder %s11, 0
      %p104 = por %p102, %p103
      %p105 = scmp.ne.s32.totalorder %s94, %s97
      %p106 = scmp.eq.s32.totalorder %s16, 1
      %p107 = por %p105, %p106
      %p108 = scmp.ne.s32.totalorder %s97, %s98
      %p109 = scmp.eq.s32.totalorder %s16, 0
      %p110 = por %p108, %p109
      %p111 = scmp.ne.s32.totalorder %s97, %s98
      %p112 = scmp.eq.s32.totalorder %s17, 1
      %p113 = por %p111, %p112
      %p115 = scmp.ne.s32.totalorder %s98, %s114
      %p116 = scmp.eq.s32.totalorder %s17, 0
      %p117 = por %p115, %p116
      %s118 = ssub.s32 %s11, %s18
      %p119 = scmp.eq.s32.totalorder %s118, 0
      %s121 = sadd.s32 %s120, 1
      %s122 = scalar_select %p119, %s120, %s121
      %p125 = pneg %p119
      %p126 = scmp.eq.s32.totalorder %s11, 1
      %p127 = por %p125, %p126
      %p128 = scmp.ne.s32.totalorder %s120, %s123
      %p129 = scmp.eq.s32.totalorder %s11, 0
      %p130 = por %p128, %p129
      %p131 = scmp.ne.s32.totalorder %s120, %s123
      %p132 = scmp.eq.s32.totalorder %s16, 1
      %p133 = por %p131, %p132
      %p134 = scmp.ne.s32.totalorder %s123, %s124
      %p135 = scmp.eq.s32.totalorder %s16, 0
      %p136 = por %p134, %p135
      %p137 = scmp.ne.s32.totalorder %s123, %s124
      %p138 = scmp.eq.s32.totalorder %s17, 1
      %p139 = por %p137, %p138
      %p141 = scmp.ne.s32.totalorder %s124, %s140
      %p142 = scmp.eq.s32.totalorder %s17, 0
      %p143 = por %p141, %p142
      %p144 = scmp.le.s32.totalorder 1, %s11
      %p145 = scmp.lt.s32.totalorder %s11, 3
      %p146 = pnand %p144, %p145
      %p147 = pneg %p146
      // Predicated region
      $region9: #{basic_deconv2d.2} parent=5 // pred_check
        _
      $region10: #{basic_deconv2d.2} parent=5 // pred_check_branch
        %149 = sbr.rel (%p146) target = $region12
      $region11: #{basic_deconv2d.2} parent=5 // pred_region
        %s150 = ssub.s32 %s11, 1
        // Predicated region
        $region13: #{basic_deconv2d.2} parent=11 // pred_check
          %p151 = pneg %p32
        $region14: #{basic_deconv2d.2} parent=11 // pred_check_branch
          %153 = sbr.rel (%p151) target = $region16
        $region15: #{basic_deconv2d.2} parent=11 // pred_region
          _
        $region16: #{basic_deconv2d.2} parent=11 // pred_fallthru
          _
      $region12: #{basic_deconv2d.2} parent=5 // pred_fallthru
        _
      %p154 = scmp.lt.s32.totalorder %s11, 2
      // Predicated region
      $region17: #{basic_deconv2d.2} parent=5 // pred_check
        %p155 = pneg %p154
      $region18: #{basic_deconv2d.2} parent=5 // pred_check_branch
        %157 = sbr.rel (%p155) target = $region20
      $region19: #{basic_deconv2d.2} parent=5 // pred_region
        // Predicated region
        $region21: #{basic_deconv2d.2} parent=19 // pred_check
          %p158 = pneg %p52
        $region22: #{basic_deconv2d.2} parent=19 // pred_check_branch
          %160 = sbr.rel (%p158) target = $region24
        $region23: #{basic_deconv2d.2} parent=19 // pred_region
          %s161 = sand.u32 %s42, 1
          %s162 = sand.u32 %s42, 1
          %s163 = smul.addr %s162, 40
          %s164 = scalar_lea.vmem [#allocation2], %s163
          %s165 = smul.u32 2, %s11
          %s166 = smul.addr %s165, 4
          %s167 = scalar_lea.vmem %s1, %s166
          // Predicated region
          $region25: #{basic_deconv2d.2} parent=23 // pred_check
            _
          $region26: #{basic_deconv2d.2} parent=23 // pred_check_branch
            %169 = sbr.rel (0) target = $region28
          $region27: #{basic_deconv2d.2} parent=23 // pred_region
            // Predicated region
            $region29: #{basic_deconv2d.2} parent=27 // pred_check
              _
            $region30: #{basic_deconv2d.2} parent=27 // pred_check_branch
              %171 = sbr.rel (0) target = $region32
            $region31: #{basic_deconv2d.2} parent=27 // pred_region
              // Predicated region
              $region44: #{basic_deconv2d.2} parent=31 // pred_check
                _
              $region45: #{basic_deconv2d.2} parent=31 // pred_check_branch
                %195 = sbr.rel (0) target = $region47
              $region46: #{basic_deconv2d.2} parent=31 // pred_region
                loop: start=0, step=1, limit=1
                $region48: #{basic_deconv2d.2} parent=46 // loop_pre_header
                  _
                $region49: #{basic_deconv2d.2} parent=46 // loop_header
                  %s197 = sphi 0, %s201
                  %p198 = scmp.ge.s32.totalorder %s197, 1
                  %s202 = sphi %s167, %s167
                  %s203 = sphi %s164, %s164
                $region50: #{basic_deconv2d.2} parent=46 // loop_header_branch
                  %200 = sbr.rel (%p198) target = $region54
                $region51: #{basic_deconv2d.2} parent=46 // loop_body
                  %v204 = vld [vmem:[%s202] sm:$0xff]
                  %205 = vst [vmem:[%s203] sm:$0xff] %v204
                  %v206 = vld [vmem:[%s202 + $0x10] sm:$0xff]
                  %207 = vst [vmem:[%s203 + $0x8] sm:$0xff] %v206
                  %v208 = vld [vmem:[%s202 + $0x20] sm:$0xff]
                  %209 = vst [vmem:[%s203 + $0x10] sm:$0xff] %v208
                  %v210 = vld [vmem:[%s202 + $0x30] sm:$0xff]
                  %211 = vst [vmem:[%s203 + $0x18] sm:$0xff] %v210
                  %v212 = vld [vmem:[%s202 + $0x40] sm:$0xff]
                  %213 = vst [vmem:[%s203 + $0x20] sm:$0xff] %v212
                $region52: #{basic_deconv2d.2} parent=46 // loop_footer
                  %s201 = sadd.s32 1, %s197
                $region53: #{basic_deconv2d.2} parent=46 // loop_footer_branch
                  %196 = sbr.rel target = $region49
                $region54: #{basic_deconv2d.2} parent=46 // loop_exit
                  _
              $region47: #{basic_deconv2d.2} parent=31 // pred_fallthru
                _
              // Predicated region
              $region55: #{basic_deconv2d.2} parent=31 // pred_check
                _
              $region56: #{basic_deconv2d.2} parent=31 // pred_check_branch
                %215 = sbr.rel target = $region58
              $region57: #{basic_deconv2d.2} parent=31 // pred_region
                _
              $region58: #{basic_deconv2d.2} parent=31 // pred_fallthru
                _
            $region32: #{basic_deconv2d.2} parent=27 // pred_fallthru
              _
            // Predicated region
            $region33: #{basic_deconv2d.2} parent=27 // pred_check
              _
            $region34: #{basic_deconv2d.2} parent=27 // pred_check_branch
              %173 = sbr.rel target = $region36
            $region35: #{basic_deconv2d.2} parent=27 // pred_region
              %s175 = ssub.s32 256, 1
              loop: start=0, step=1, limit=1
              $region37: #{basic_deconv2d.2} parent=35 // loop_pre_header
                _
              $region38: #{basic_deconv2d.2} parent=35 // loop_header
                %s177 = sphi 0, %s181
                %p178 = scmp.ge.s32.totalorder %s177, 1
                %s182 = sphi %s167, %s167
                %s183 = sphi %s164, %s164
              $region39: #{basic_deconv2d.2} parent=35 // loop_header_branch
                %180 = sbr.rel (%p178) target = $region43
              $region40: #{basic_deconv2d.2} parent=35 // loop_body
                %v184 = vld [vmem:[%s182] sm:%s175]
                %185 = vst [vmem:[%s183] sm:%s175] %v184
                %v186 = vld [vmem:[%s182 + $0x10] sm:%s175]
                %187 = vst [vmem:[%s183 + $0x8] sm:%s175] %v186
                %v188 = vld [vmem:[%s182 + $0x20] sm:%s175]
                %189 = vst [vmem:[%s183 + $0x10] sm:%s175] %v188
                %v190 = vld [vmem:[%s182 + $0x30] sm:%s175]
                %191 = vst [vmem:[%s183 + $0x18] sm:%s175] %v190
                %v192 = vld [vmem:[%s182 + $0x40] sm:%s175]
                %193 = vst [vmem:[%s183 + $0x20] sm:%s175] %v192
              $region41: #{basic_deconv2d.2} parent=35 // loop_footer
                %s181 = sadd.s32 1, %s177
              $region42: #{basic_deconv2d.2} parent=35 // loop_footer_branch
                %176 = sbr.rel target = $region38
              $region43: #{basic_deconv2d.2} parent=35 // loop_exit
                _
            $region36: #{basic_deconv2d.2} parent=27 // pred_fallthru
              _
          $region28: #{basic_deconv2d.2} parent=23 // pred_fallthru
            _
          %216 = vnop
        $region24: #{basic_deconv2d.2} parent=19 // pred_fallthru
          _
      $region20: #{basic_deconv2d.2} parent=5 // pred_fallthru
        _
      %p217 = scmp.le.s32.totalorder 1, %s11
      %p218 = scmp.lt.s32.totalorder %s11, 3
      %p219 = pnand %p217, %p218
      %p220 = pneg %p219
      // Predicated region
      $region59: #{basic_deconv2d.2} parent=5 // pred_check
        _
      $region60: #{basic_deconv2d.2} parent=5 // pred_check_branch
        %222 = sbr.rel (%p219) target = $region62
      $region61: #{basic_deconv2d.2} parent=5 // pred_region
        %s223 = ssub.s32 %s11, 1
        %s224 = sand.u32 %s45, 1
        %s225 = sand.u32 %s45, 1
        %s226 = smul.addr %s225, 40
        %s227 = scalar_lea.vmem [#allocation2], %s226
        // Predicated region
        $region63: #{basic_deconv2d.2} parent=61 // pred_check
          %p228 = pneg %p58
        $region64: #{basic_deconv2d.2} parent=61 // pred_check_branch
          %230 = sbr.rel (%p228) target = $region66
        $region65: #{basic_deconv2d.2} parent=61 // pred_region
          _
        $region66: #{basic_deconv2d.2} parent=61 // pred_fallthru
          _
        %p231 = pneg %p32
        %p232 = pneg %p29
        %s233 = sand.u32 %s45, 1
        %s234 = sand.u32 %s45, 1
        %s235 = smul.addr %s234, 40
        %s236 = scalar_lea.vmem [#allocation2], %s235
        %p237 = pneg %p58
        %p238 = pneg %p55
        %p239 = pneg %p84
        %p240 = pneg %p81
        %s241 = sand.u32 %s71, 1
        %s242 = sand.u32 %s71, 1
        %s243 = smul.addr %s242, 32
        %s244 = scalar_lea.vmem [#allocation3], %s243
        %p245 = pneg %p110
        %p246 = pneg %p107
        %p247 = scmp.lt.s32.totalorder %s16, 1
        %s248 = scalar_select %p247, %s16, 1
        %s249 = smul.addr %s248, 4
        %s250 = smul.addr %s249, 8
        %s251 = scalar_lea.vmem %s3, %s250
        %p252 = pneg %p136
        %p253 = pneg %p133
        %p254 = scmp.lt.s32.totalorder %s16, 1
        %s255 = scalar_select %p254, %s16, 1
        %s256 = smul.addr %s255, 4
        %s257 = smul.addr %s256, 8
        %s258 = scalar_lea.vmem %s4, %s257
        %s259 = smul.u32 2, %s16
        %s260 = smul.u32 2, %s16
        %p261 = scmp.lt.s32.totalorder %s16, 1
        %s262 = scalar_select %p261, %s16, 1
        %s263 = smul.addr %s262, 4
        %s264 = smul.addr %s263, 8
        %s265 = scalar_lea.vmem %s3, %s264
        %p266 = scmp.lt.s32.totalorder %s16, 1
        %s267 = scalar_select %p266, %s16, 1
        %s268 = smul.addr %s267, 4
        %s269 = smul.addr %s268, 8
        %s270 = scalar_lea.vmem %s4, %s269
        %v272 = vld [vmem:[%s0] sm:$0xf]
        %v273 = vld [vmem:[%s0 + $0x4] sm:$0xf]
        %v274 = vld [vmem:[%s0 + $0x8] sm:$0xf]
        %v275 = vld [vmem:[%s0 + $0xc] sm:$0xf]
        %v276 = vld [vmem:[%s227] sm:$0xff]
        %v277 = vld [vmem:[%s227 + $0x8] sm:$0xff]
        %v278 = vld [vmem:[%s227 + $0x10] sm:$0xff]
        %v279 = vld [vmem:[%s227 + $0x18] sm:$0xff]
        %v280 = vld [vmem:[%s227 + $0x20] sm:$0x33]
        %v285 = vunpack.c.l.b16 %v272
        %v286 = vunpack.c.l.b16 %v273
        %v287 = vunpack.c.l.b16 %v274
        %v288 = vunpack.c.l.b16 %v275
        %v289 = vpack.c.b16 %v286, %v285
        %v290 = vpack.c.b16 %v288, %v287
        %v296 = vunpack.c.l.b16 %v276
        %v297 = vunpack.c.h.b16 %v276
        %v298 = vunpack.c.l.b16 %v277
        %v299 = vunpack.c.h.b16 %v277
        %v300 = vunpack.c.l.b16 %v278
        %v301 = vunpack.c.h.b16 %v278
        %v302 = vunpack.c.l.b16 %v279
        %v303 = vunpack.c.h.b16 %v279
        %v304 = vunpack.c.l.b16 %v280
        %v305 = vunpack.c.h.b16 %v280
        %v306 = vpack.c.b16 %v298, %v296
        %v307 = vpack.c.b16 %v299, %v297
        %v308 = vpack.c.b16 %v302, %v300
        %v309 = vpack.c.b16 %v303, %v301
        %v310 = vpack.c.b16 %v304, %v304
        %v311 = vpack.c.b16 %v305, %v305
        %vm316 = vcmask 293888
        %v318 = vsel %vm316, %v289, 0
        %v321 = vsel %vm316, %v290, 0
        %vm323 = vcmask 1041408
        %v325 = vsel %vm323, %v310, 0
        %v328 = vsel %vm323, %v311, 0
        %330 = vmatpush.bf16.msra.mxu0 0
        %331 = vmatpush.bf16.msra.mxu0 0
        %332 = vmatpush.bf16.msra.mxu0 0
        %333 = vmatpush.bf16.msra.mxu0 0
        %334 = vmatpush.bf16.msra.mxu0 0
        %335 = vmatpush.bf16.msra.mxu0 %v325
        %336 = vmatpush.bf16.msra.mxu0 %v308
        %337 = vmatpush.bf16.msra.mxu0 %v306
        %338 = vmatmul.bf16.gmra.mxu0 %v318
        %v339 = vpop.f32.mrf.mxu0
        %v340 = vadd.f32 0.0, %v339
        %v341 = vpop.f32.mrf.mxu0
        %v342 = vadd.f32 0.0, %v341
        %343 = vmatmul.bf16.gmra.mxu0 %v321
        %v344 = vpop.f32.mrf.mxu0
        %v345 = vadd.f32 0.0, %v344
        %v346 = vpop.f32.mrf.mxu0
        %v347 = vadd.f32 0.0, %v346
        %348 = vdwg.mxu0
        %349 = vmatpush.bf16.msra.mxu0 0
        %350 = vmatpush.bf16.msra.mxu0 0
        %351 = vmatpush.bf16.msra.mxu0 0
        %352 = vmatpush.bf16.msra.mxu0 0
        %353 = vmatpush.bf16.msra.mxu0 0
        %354 = vmatpush.bf16.msra.mxu0 %v328
        %355 = vmatpush.bf16.msra.mxu0 %v309
        %356 = vmatpush.bf16.msra.mxu0 %v307
        %357 = vmatmul.bf16.gmra.mxu0 %v318
        %v358 = vpop.f32.mrf.mxu0
        %v359 = vadd.f32 0.0, %v358
        %v360 = vpop.f32.mrf.mxu0
        %v361 = vadd.f32 0.0, %v360
        %362 = vmatmul.bf16.gmra.mxu0 %v321
        %v363 = vpop.f32.mrf.mxu0
        %v364 = vadd.f32 0.0, %v363
        %v365 = vpop.f32.mrf.mxu0
        %v366 = vadd.f32 0.0, %v365
        %367 = vdwg.mxu0
        %v368 = vpack.c.bf16 %v359, %v340
        %v369 = vpack.c.bf16 %v361, %v342
        %v370 = vpack.c.bf16 %v364, %v345
        %v371 = vpack.c.bf16 %v366, %v347
        %372 = vst [vmem:[%s244] sm:$0xff] %v368
        %373 = vst [vmem:[%s244 + $0x8] sm:$0xff] %v369
        %374 = vst [vmem:[%s244 + $0x10] sm:$0xff] %v370
        %375 = vst [vmem:[%s244 + $0x18] sm:$0xff] %v371
        %s376 = smul.u32 %s16, 256
        %v377 = vlaneseq
        %v378 = vand.u32 %v377, 127
        %v379 = vadd.s32 %v378, 128
        %v380 = vstv %s376
        %v381 = vadd.s32 %v380, %v378
        %v382 = vadd.s32 %v380, %v379
        %vm383 = vcmp.lt.s32.totalorder %v381, 512
        %vm384 = vcmp.lt.s32.totalorder %v382, 512
        %v385 = vsel %vm383, 1, 0
        %v386 = vsel %vm384, 1, 0
        %v387 = vcvt.s32.f32 %v385
        %v388 = vcvt.s32.f32 %v386
        %v389 = vadd.f32 %v387, %v388
        %390 = vadd.xlane.f32.xlu0 %v389
        %v391 = vpop.xlane.xlu0 %390
        %v392 = vmax.f32 %v391, 1.0
        %vm393 = vcmp.eq.s32.totalorder %v385, 1
        %vm394 = vcmp.eq.s32.totalorder %v386, 1
        %v395 = vsel %vm393, %v340, 0.0
        %v396 = vsel %vm394, %v359, 0.0
        %v397 = vsel %vm393, %v342, 0.0
        %v398 = vsel %vm394, %v361, 0.0
        %v399 = vsel %vm393, %v345, 0.0
        %v400 = vsel %vm394, %v364, 0.0
        %v401 = vsel %vm393, %v347, 0.0
        %v402 = vsel %vm394, %v366, 0.0
        %v403 = vadd.f32 %v395, %v396
        %404 = vadd.xlane.f32.xlu0 %v403
        %v405 = vpop.xlane.xlu0 %404
        %v406 = vadd.f32 %v397, %v398
        %407 = vadd.xlane.f32.xlu0 %v406
        %v408 = vpop.xlane.xlu0 %407
        %v409 = vadd.f32 %v399, %v400
        %410 = vadd.xlane.f32.xlu0 %v409
        %v411 = vpop.xlane.xlu0 %410
        %v412 = vadd.f32 %v401, %v402
        %413 = vadd.xlane.f32.xlu0 %v412
        %v414 = vpop.xlane.xlu0 %413
        %v415 = vrcp.pop %v392
        %v416 = vmul.f32 %v392, %v415
        %v417 = vsub.f32 1.0, %v416
        %v418 = vmul.f32 %v415, %v417
        %v419 = vadd.f32 %v415, %v418
        %vm420 = vweird.f32 %v392
        %vm421 = vweird.f32 %v415
        %vm422 = vmor %vm420, %vm421
        %v423 = vsel %vm422, %v415, %v419
        %v424 = vand.u32 2147483647, %v392
        %vm425 = vcmp.eq.f32.partialorder %v424, 8.507059e+37
        %v426 = vand.u32 %v392, 2147483648
        %v427 = vor.u32 1.1754944e-38, %v426
        %v428 = vsel %vm425, %v427, %v423
        %v429 = vmul.f32 %v405, %v428
        %v430 = vmul.f32 %v408, %v428
        %v431 = vmul.f32 %v411, %v428
        %v432 = vmul.f32 %v414, %v428
        %v433 = vsub.f32 %v340, %v429
        %v434 = vsub.f32 %v359, %v429
        %v435 = vsub.f32 %v342, %v430
        %v436 = vsub.f32 %v361, %v430
        %v437 = vsub.f32 %v345, %v431
        %v438 = vsub.f32 %v364, %v431
        %v439 = vsub.f32 %v347, %v432
        %v440 = vsub.f32 %v366, %v432
        %v441 = vsel %vm393, %v433, 0.0
        %v442 = vsel %vm394, %v434, 0.0
        %v443 = vsel %vm393, %v435, 0.0
        %v444 = vsel %vm394, %v436, 0.0
        %v445 = vsel %vm393, %v437, 0.0
        %v446 = vsel %vm394, %v438, 0.0
        %v447 = vsel %vm393, %v439, 0.0
        %v448 = vsel %vm394, %v440, 0.0
        %v449 = vmul.f32 %v441, %v441
        %v450 = vmul.f32 %v442, %v442
        %v451 = vmul.f32 %v443, %v443
        %v452 = vmul.f32 %v444, %v444
        %v453 = vmul.f32 %v445, %v445
        %v454 = vmul.f32 %v446, %v446
        %v455 = vmul.f32 %v447, %v447
        %v456 = vmul.f32 %v448, %v448
        %v457 = vadd.f32 %v449, %v450
        %458 = vadd.xlane.f32.xlu0 %v457
        %v459 = vpop.xlane.xlu0 %458
        %v460 = vadd.f32 %v451, %v452
        %461 = vadd.xlane.f32.xlu0 %v460
        %v462 = vpop.xlane.xlu0 %461
        %v463 = vadd.f32 %v453, %v454
        %464 = vadd.xlane.f32.xlu0 %v463
        %v465 = vpop.xlane.xlu0 %464
        %v466 = vadd.f32 %v455, %v456
        %467 = vadd.xlane.f32.xlu0 %v466
        %v468 = vpop.xlane.xlu0 %467
        %vm469 = vcmask 7168
        %470 = vst.msk [vmem:[%s265] sm:$0xff] %vm469, %v405
        %471 = vst.msk [vmem:[%s265 + $0x8] sm:$0xff] %vm469, %v408
        %472 = vst.msk [vmem:[%s265 + $0x10] sm:$0xff] %vm469, %v411
        %473 = vst.msk [vmem:[%s265 + $0x18] sm:$0xff] %vm469, %v414
        %474 = vst.msk [vmem:[%s270] sm:$0xff] %vm469, %v459
        %475 = vst.msk [vmem:[%s270 + $0x8] sm:$0xff] %vm469, %v462
        %476 = vst.msk [vmem:[%s270 + $0x10] sm:$0xff] %vm469, %v465
        %477 = vst.msk [vmem:[%s270 + $0x18] sm:$0xff] %vm469, %v468
        %s478 = sand.u32 %s71, 1
        %s479 = sand.u32 %s71, 1
        %s480 = smul.addr %s479, 32
        %s481 = scalar_lea.vmem [#allocation3], %s480
        %p482 = scmp.lt.s32.totalorder %s16, 1
        %s483 = scalar_select %p482, %s16, 1
        %s484 = smul.addr %s483, 4
        %s485 = smul.addr %s484, 8
        %s486 = scalar_lea.vmem %s3, %s485
        %p487 = scmp.lt.s32.totalorder %s16, 1
        %s488 = scalar_select %p487, %s16, 1
        %s489 = smul.addr %s488, 4
        %s490 = smul.addr %s489, 8
        %s491 = scalar_lea.vmem %s4, %s490
        // Predicated region
        $region67: #{basic_deconv2d.2} parent=61 // pred_check
          %p492 = pneg %p81
        $region68: #{basic_deconv2d.2} parent=61 // pred_check_branch
          %494 = sbr.rel (%p492) target = $region70
        $region69: #{basic_deconv2d.2} parent=61 // pred_region
          %s495 = smul.u32 2, %s16
          %s496 = smul.addr %s495, 4
          %s497 = scalar_lea.vmem %s2, %s496
          // Predicated region
          $region71: #{basic_deconv2d.2} parent=69 // pred_check
            _
          $region72: #{basic_deconv2d.2} parent=69 // pred_check_branch
            %499 = sbr.rel (0) target = $region74
          $region73: #{basic_deconv2d.2} parent=69 // pred_region
            // Predicated region
            $region75: #{basic_deconv2d.2} parent=73 // pred_check
              _
            $region76: #{basic_deconv2d.2} parent=73 // pred_check_branch
              %501 = sbr.rel (0) target = $region78
            $region77: #{basic_deconv2d.2} parent=73 // pred_region
              // Predicated region
              $region90: #{basic_deconv2d.2} parent=77 // pred_check
                _
              $region91: #{basic_deconv2d.2} parent=77 // pred_check_branch
                %523 = sbr.rel (0) target = $region93
              $region92: #{basic_deconv2d.2} parent=77 // pred_region
                loop: start=0, step=1, limit=1
                $region94: #{basic_deconv2d.2} parent=92 // loop_pre_header
                  _
                $region95: #{basic_deconv2d.2} parent=92 // loop_header
                  %s525 = sphi 0, %s529
                  %p526 = scmp.ge.s32.totalorder %s525, 1
                  %s530 = sphi %s481, %s481
                  %s531 = sphi %s497, %s497
                $region96: #{basic_deconv2d.2} parent=92 // loop_header_branch
                  %528 = sbr.rel (%p526) target = $region100
                $region97: #{basic_deconv2d.2} parent=92 // loop_body
                  %v532 = vld [vmem:[%s530] sm:$0xff]
                  %533 = vst [vmem:[%s531] sm:$0xff] %v532
                  %v534 = vld [vmem:[%s530 + $0x8] sm:$0xff]
                  %535 = vst [vmem:[%s531 + $0x10] sm:$0xff] %v534
                  %v536 = vld [vmem:[%s530 + $0x10] sm:$0xff]
                  %537 = vst [vmem:[%s531 + $0x20] sm:$0xff] %v536
                  %v538 = vld [vmem:[%s530 + $0x18] sm:$0xff]
                  %539 = vst [vmem:[%s531 + $0x30] sm:$0xff] %v538
                $region98: #{basic_deconv2d.2} parent=92 // loop_footer
                  %s529 = sadd.s32 1, %s525
                $region99: #{basic_deconv2d.2} parent=92 // loop_footer_branch
                  %524 = sbr.rel target = $region95
                $region100: #{basic_deconv2d.2} parent=92 // loop_exit
                  _
              $region93: #{basic_deconv2d.2} parent=77 // pred_fallthru
                _
              // Predicated region
              $region101: #{basic_deconv2d.2} parent=77 // pred_check
                _
              $region102: #{basic_deconv2d.2} parent=77 // pred_check_branch
                %541 = sbr.rel target = $region104
              $region103: #{basic_deconv2d.2} parent=77 // pred_region
                _
              $region104: #{basic_deconv2d.2} parent=77 // pred_fallthru
                _
            $region78: #{basic_deconv2d.2} parent=73 // pred_fallthru
              _
            // Predicated region
            $region79: #{basic_deconv2d.2} parent=73 // pred_check
              _
            $region80: #{basic_deconv2d.2} parent=73 // pred_check_branch
              %503 = sbr.rel target = $region82
            $region81: #{basic_deconv2d.2} parent=73 // pred_region
              %s505 = ssub.s32 256, 1
              loop: start=0, step=1, limit=1
              $region83: #{basic_deconv2d.2} parent=81 // loop_pre_header
                _
              $region84: #{basic_deconv2d.2} parent=81 // loop_header
                %s507 = sphi 0, %s511
                %p508 = scmp.ge.s32.totalorder %s507, 1
                %s512 = sphi %s481, %s481
                %s513 = sphi %s497, %s497
              $region85: #{basic_deconv2d.2} parent=81 // loop_header_branch
                %510 = sbr.rel (%p508) target = $region89
              $region86: #{basic_deconv2d.2} parent=81 // loop_body
                %v514 = vld [vmem:[%s512] sm:%s505]
                %515 = vst [vmem:[%s513] sm:%s505] %v514
                %v516 = vld [vmem:[%s512 + $0x8] sm:%s505]
                %517 = vst [vmem:[%s513 + $0x10] sm:%s505] %v516
                %v518 = vld [vmem:[%s512 + $0x10] sm:%s505]
                %519 = vst [vmem:[%s513 + $0x20] sm:%s505] %v518
                %v520 = vld [vmem:[%s512 + $0x18] sm:%s505]
                %521 = vst [vmem:[%s513 + $0x30] sm:%s505] %v520
              $region87: #{basic_deconv2d.2} parent=81 // loop_footer
                %s511 = sadd.s32 1, %s507
              $region88: #{basic_deconv2d.2} parent=81 // loop_footer_branch
                %506 = sbr.rel target = $region84
              $region89: #{basic_deconv2d.2} parent=81 // loop_exit
                _
            $region82: #{basic_deconv2d.2} parent=73 // pred_fallthru
              _
          $region74: #{basic_deconv2d.2} parent=69 // pred_fallthru
            _
          %542 = vnop
        $region70: #{basic_deconv2d.2} parent=61 // pred_fallthru
          _
        // Predicated region
        $region105: #{basic_deconv2d.2} parent=61 // pred_check
          %p543 = pneg %p107
        $region106: #{basic_deconv2d.2} parent=61 // pred_check_branch
          %545 = sbr.rel (%p543) target = $region108
        $region107: #{basic_deconv2d.2} parent=61 // pred_region
          _
        $region108: #{basic_deconv2d.2} parent=61 // pred_fallthru
          _
        // Predicated region
        $region109: #{basic_deconv2d.2} parent=61 // pred_check
          %p546 = pneg %p133
        $region110: #{basic_deconv2d.2} parent=61 // pred_check_branch
          %548 = sbr.rel (%p546) target = $region112
        $region111: #{basic_deconv2d.2} parent=61 // pred_region
          _
        $region112: #{basic_deconv2d.2} parent=61 // pred_fallthru
          _
      $region62: #{basic_deconv2d.2} parent=5 // pred_fallthru
        _
      %p549 = scmp.le.s32.totalorder 2, %s11
      // Predicated region
      $region113: #{basic_deconv2d.2} parent=5 // pred_check
        %p550 = pneg %p549
      $region114: #{basic_deconv2d.2} parent=5 // pred_check_branch
        %552 = sbr.rel (%p550) target = $region116
      $region115: #{basic_deconv2d.2} parent=5 // pred_region
        %s553 = ssub.s32 %s11, 2
        // Predicated region
        $region117: #{basic_deconv2d.2} parent=115 // pred_check
          %p554 = pneg %p87
        $region118: #{basic_deconv2d.2} parent=115 // pred_check_branch
          %556 = sbr.rel (%p554) target = $region120
        $region119: #{basic_deconv2d.2} parent=115 // pred_region
          %s557 = sand.u32 %s72, 1
          %s558 = sand.u32 %s72, 1
          %s559 = smul.addr %s558, 32
          %s560 = scalar_lea.vmem [#allocation3], %s559
        $region120: #{basic_deconv2d.2} parent=115 // pred_fallthru
          _
        // Predicated region
        $region121: #{basic_deconv2d.2} parent=115 // pred_check
          %p561 = pneg %p113
        $region122: #{basic_deconv2d.2} parent=115 // pred_check_branch
          %563 = sbr.rel (%p561) target = $region124
        $region123: #{basic_deconv2d.2} parent=115 // pred_region
          %p564 = scmp.lt.s32.totalorder %s17, 1
          %s565 = scalar_select %p564, %s17, 1
          %s566 = smul.addr %s565, 4
          %s567 = smul.addr %s566, 8
          %s568 = scalar_lea.vmem %s3, %s567
        $region124: #{basic_deconv2d.2} parent=115 // pred_fallthru
          _
        // Predicated region
        $region125: #{basic_deconv2d.2} parent=115 // pred_check
          %p569 = pneg %p139
        $region126: #{basic_deconv2d.2} parent=115 // pred_check_branch
          %571 = sbr.rel (%p569) target = $region128
        $region127: #{basic_deconv2d.2} parent=115 // pred_region
          %p572 = scmp.lt.s32.totalorder %s17, 1
          %s573 = scalar_select %p572, %s17, 1
          %s574 = smul.addr %s573, 4
          %s575 = smul.addr %s574, 8
          %s576 = scalar_lea.vmem %s4, %s575
        $region128: #{basic_deconv2d.2} parent=115 // pred_fallthru
          _
      $region116: #{basic_deconv2d.2} parent=5 // pred_fallthru
        _
    $region6: #{basic_deconv2d.2} parent=1 // loop_footer
      %s15 = sadd.s32 1, %s11
    $region7: #{basic_deconv2d.2} parent=1 // loop_footer_branch
      %10 = sbr.rel target = $region3
    $region8: #{basic_deconv2d.2} parent=1 // loop_exit
      _

</llo_original>
